<compile_context>
chip_gen: v5e
topology: v5e:2x2
jax: 0.10.0
libtpu: 0.0.40
codegen_flags: <defaults>
</compile_context>

<pallas_src>
import functools

import jax
import jax.numpy as jnp
from jax import lax
from jax.experimental import pallas as pl
from jax.experimental.pallas import tpu as pltpu

H1, H2 = 32, 32  # hidden widths fixed by the module


def _round_up(n, m):
    return ((n + m - 1) // m) * m


def mlp_kernel(x_ref, w1_ref, b1_ref, w2_ref, b2_ref, w3t_ref, b3_ref, o_ref):
    x = x_ref[...]                                               # (TB, in_dim) f32

    # z1 = W1 @ x^T : contract the in_dim axes of both operands -> (32, TB).
    z1 = lax.dot_general(w1_ref[...], x,
                         dimension_numbers=(((1,), (1,)), ((), ())),
                         preferred_element_type=jnp.float32)
    # sigmoid on the EUP (exp) + VPU divide; written explicitly for robust lowering.
    a1 = 1.0 / (1.0 + jnp.exp(-(z1 + b1_ref[...])))              # (32, TB) f32

    # h2 = relu(W2 @ h1 + b2), all-f32 (no bf16 round-trips on VMEM activations).
    z2 = jnp.dot(w2_ref[...], a1, preferred_element_type=jnp.float32)
    a2 = jnp.maximum(z2 + b2_ref[...], 0.0)                      # (32, TB) f32

    # out = W3 @ h2 + b3 as broadcast-multiply + sublane reduce -> (1, TB).
    y = jnp.sum(w3t_ref[...] * a2, axis=0, keepdims=True)
    o_ref[...] = y + b3_ref[...]


def _pick_batch_tile(B, in_dim, tb_max):
    """Batch tile (multiple of 128) from a VMEM budget; keep >=2 grid steps
    when the batch allows so megacore (v7x) can shard the 'parallel' axis."""
    Bp = _round_up(B, 128)
    # Per-batch-element VMEM bytes: double-buffered f32 x tile + double-buffered
    # f32 output row + ~4 f32 (32, TB) intermediates.
    per_elem = 2 * in_dim * 4 + 2 * 4 + 4 * H2 * 4
    budget = 10 * 1024 * 1024                 # under v5e's 16 MiB scoped default
    cap = max(128, (budget // per_elem) // 128 * 128)
    tb = max(128, min(_round_up(tb_max, 128), cap, Bp))
    if Bp >= 2 * 128 and -(-B // tb) < 2:     # single step -> split for megacore
        tb = _round_up(-(-Bp // 2), 128)
    return tb


@functools.partial(jax.jit, static_argnames=("tb_max",))
def model_si_forward(x, params, tb_max=4096):
    """Fused Model_SI forward (train=True). x: (B, in_dim) f32 -> (B, 1) f32."""
    w1, b1, w2, b2, w3, b3 = params
    B, in_dim = x.shape
    TB = _pick_batch_tile(B, in_dim, tb_max)
    grid = (pl.cdiv(B, TB),)

    w3t = w3.T  # (32, 1): one-time relayout of a 32-element weight (negligible)
    const = lambda a: pl.BlockSpec(a.shape, lambda i: (0, 0))

    cost = pl.CostEstimate(
        flops=2 * B * (in_dim * H1 + H1 * H2 + H2),
        transcendentals=B * H1,
        bytes_accessed=(x.size * 4 + B * 4
                        + (w1.size + w2.size + w3.size
                           + b1.size + b2.size + b3.size) * 4),
    )

    yt = pl.pallas_call(
        mlp_kernel,
        out_shape=jax.ShapeDtypeStruct((1, B), jnp.float32),
        grid_spec=pltpu.PrefetchScalarGridSpec(
            num_scalar_prefetch=0,
            grid=grid,
            in_specs=[
                pl.BlockSpec((TB, in_dim), lambda i: (i, 0)),  # only moving stream
                const(w1), const(b1),
                const(w2), const(b2),
                const(w3t), const(b3),
            ],
            out_specs=pl.BlockSpec((1, TB), lambda i: (0, i)),  # lane-dense output
        ),
        compiler_params=pltpu.CompilerParams(
            dimension_semantics=("parallel",),
            vmem_limit_bytes=32 * 1024 * 1024),
        cost_estimate=cost,
    )(x, w1, b1, w2, b2, w3t, b3)

    return yt.reshape(B, 1)


def init_params(key, in_dim):
    """PyTorch-native shapes: weight (out, in); bias stored as (out, 1)."""
    k1, k2, k3, k4, k5, k6 = jax.random.split(key, 6)
    s1 = float(in_dim) ** -0.5
    s2 = 32.0 ** -0.5
    w1 = jax.random.uniform(k1, (H1, in_dim), jnp.float32, -s1, s1)
    b1 = jax.random.uniform(k2, (H1, 1), jnp.float32, -s1, s1)
    w2 = jax.random.uniform(k3, (H2, H1), jnp.float32, -s2, s2)
    b2 = jax.random.uniform(k4, (H2, 1), jnp.float32, -s2, s2)
    w3 = jax.random.uniform(k5, (1, H2), jnp.float32, -s2, s2)
    b3 = jax.random.uniform(k6, (1, 1), jnp.float32, -s2, s2)
    return (w1, b1, w2, b2, w3, b3)


def model_si_ref(x, params):
    """Pure-JAX f32 reference of the PyTorch forward (train=True)."""
    w1, b1, w2, b2, w3, b3 = params
    h1 = jax.nn.sigmoid(x @ w1.T + b1.T)
    h2 = jnp.maximum(h1 @ w2.T + b2.T, 0.0)
    return h2 @ w3.T + b3.T


if __name__ == "__main__":
    key = jax.random.PRNGKey(0)
    in_dim = 16
    batch = 512          # -> two 256-wide tiles: exercises pipelining + megacore

    kx, kp = jax.random.split(key)
    x = jax.random.normal(kx, (batch, in_dim), dtype=jnp.float32)
    params = init_params(kp, in_dim)

    out = jax.block_until_ready(model_si_forward(x, params))
    assert out.shape == (batch, 1), out.shape
    ref = model_si_ref(x, params)
    assert jnp.allclose(out, ref, atol=2e-2, rtol=2e-2), (
        f"max abs diff = {jnp.max(jnp.abs(out - ref))}")

    # Tiny batch (single partial tile).
    x2 = jax.random.normal(kx, (8, in_dim), dtype=jnp.float32)
    out2 = jax.block_until_ready(model_si_forward(x2, params))
    assert out2.shape == (8, 1), out2.shape
    ref2 = model_si_ref(x2, params)
    assert jnp.allclose(out2, ref2, atol=2e-2, rtol=2e-2), (
        f"small-batch max abs diff = {jnp.max(jnp.abs(out2 - ref2))}")

    # Ragged batch (non-multiple of the tile) -> exercises bounded last block.
    x3 = jax.random.normal(kx, (300, in_dim), dtype=jnp.float32)
    out3 = jax.block_until_ready(model_si_forward(x3, params))
    assert out3.shape == (300, 1), out3.shape
    ref3 = model_si_ref(x3, params)
    assert jnp.allclose(out3, ref3, atol=2e-2, rtol=2e-2), (
        f"ragged-batch max abs diff = {jnp.max(jnp.abs(out3 - ref3))}")

    print("KERNEL_OK")
</pallas_src>

<mosaic_0001>
module attributes {stable_mosaic.version = 11 : i64} {
  func.func @mlp_kernel(%arg0: i32, %arg1: memref<256x16xf32, #tpu.memory_space<vmem>>, %arg2: memref<32x16xf32, #tpu.memory_space<vmem>>, %arg3: memref<32x1xf32, #tpu.memory_space<vmem>>, %arg4: memref<32x32xf32, #tpu.memory_space<vmem>>, %arg5: memref<32x1xf32, #tpu.memory_space<vmem>>, %arg6: memref<32x1xf32, #tpu.memory_space<vmem>>, %arg7: memref<1x1xf32, #tpu.memory_space<vmem>>, %arg8: memref<1x256xf32, #tpu.memory_space<vmem>>) attributes {dimension_semantics = [#tpu.dimension_semantics<parallel>], iteration_bounds = array<i64: 2>, scalar_prefetch = 0 : i64, scratch_operands = 0 : i64, tpu.core_type = #tpu.core_type<tc>, window_params = [{transform_indices = @transform_0, window_bounds = array<i64: 256, 16>}, {pipeline_mode = #tpu.pipeline_mode<synchronous>, transform_indices = @transform_1, window_bounds = array<i64: 32, 16>}, {pipeline_mode = #tpu.pipeline_mode<synchronous>, transform_indices = @transform_2, window_bounds = array<i64: 32, 1>}, {pipeline_mode = #tpu.pipeline_mode<synchronous>, transform_indices = @transform_3, window_bounds = array<i64: 32, 32>}, {pipeline_mode = #tpu.pipeline_mode<synchronous>, transform_indices = @transform_4, window_bounds = array<i64: 32, 1>}, {pipeline_mode = #tpu.pipeline_mode<synchronous>, transform_indices = @transform_5, window_bounds = array<i64: 32, 1>}, {pipeline_mode = #tpu.pipeline_mode<synchronous>, transform_indices = @transform_6, window_bounds = array<i64: 1, 1>}, {transform_indices = @transform_7, window_bounds = array<i64: 1, 256>}]} {
    %c0 = arith.constant 0 : index
    %c0_0 = arith.constant 0 : index
    %0 = vector.load %arg1[%c0, %c0_0] : memref<256x16xf32, #tpu.memory_space<vmem>>, vector<256x16xf32>
    %c0_1 = arith.constant 0 : index
    %c0_2 = arith.constant 0 : index
    %1 = vector.load %arg2[%c0_1, %c0_2] : memref<32x16xf32, #tpu.memory_space<vmem>>, vector<32x16xf32>
    %cst = arith.constant dense<0.000000e+00> : vector<32x256xf32>
    %2 = tpu.matmul %1, %0, %cst {dimension_numbers = #tpu.dot_dimension_numbers<[1], [1], [0], [0], [0, 0, 1, 0], [], []>} : vector<32x16xf32>, vector<256x16xf32>, vector<32x256xf32> -> vector<32x256xf32>
    %c0_3 = arith.constant 0 : index
    %c0_4 = arith.constant 0 : index
    %3 = vector.load %arg3[%c0_3, %c0_4] : memref<32x1xf32, #tpu.memory_space<vmem>>, vector<32x1xf32>
    %4 = vector.broadcast %3 : vector<32x1xf32> to vector<32x256xf32>
    %5 = arith.addf %2, %4 : vector<32x256xf32>
    %cst_5 = arith.constant 0.000000e+00 : f32
    %6 = vector.broadcast %cst_5 : f32 to vector<32x256xf32>
    %7 = arith.subf %6, %5 : vector<32x256xf32>
    %8 = math.exp %7 : vector<32x256xf32>
    %cst_6 = arith.constant 1.000000e+00 : f32
    %9 = vector.broadcast %cst_6 : f32 to vector<32x256xf32>
    %10 = arith.addf %9, %8 : vector<32x256xf32>
    %cst_7 = arith.constant 1.000000e+00 : f32
    %11 = vector.broadcast %cst_7 : f32 to vector<32x256xf32>
    %12 = arith.divf %11, %10 : vector<32x256xf32>
    %c0_8 = arith.constant 0 : index
    %c0_9 = arith.constant 0 : index
    %13 = vector.load %arg4[%c0_8, %c0_9] : memref<32x32xf32, #tpu.memory_space<vmem>>, vector<32x32xf32>
    %cst_10 = arith.constant dense<0.000000e+00> : vector<32x256xf32>
    %14 = tpu.matmul %13, %12, %cst_10 {dimension_numbers = #tpu.dot_dimension_numbers<[1], [0], [0], [1], [0, 0, 1, 1], [], []>} : vector<32x32xf32>, vector<32x256xf32>, vector<32x256xf32> -> vector<32x256xf32>
    %c0_11 = arith.constant 0 : index
    %c0_12 = arith.constant 0 : index
    %15 = vector.load %arg5[%c0_11, %c0_12] : memref<32x1xf32, #tpu.memory_space<vmem>>, vector<32x1xf32>
    %16 = vector.broadcast %15 : vector<32x1xf32> to vector<32x256xf32>
    %17 = arith.addf %14, %16 : vector<32x256xf32>
    %cst_13 = arith.constant 0.000000e+00 : f32
    %18 = vector.broadcast %cst_13 : f32 to vector<32x256xf32>
    %19 = arith.maximumf %17, %18 : vector<32x256xf32>
    %c0_14 = arith.constant 0 : index
    %c0_15 = arith.constant 0 : index
    %20 = vector.load %arg6[%c0_14, %c0_15] : memref<32x1xf32, #tpu.memory_space<vmem>>, vector<32x1xf32>
    %21 = vector.broadcast %20 : vector<32x1xf32> to vector<32x256xf32>
    %22 = arith.mulf %21, %19 : vector<32x256xf32>
    %cst_16 = arith.constant dense<0.000000e+00> : vector<256xf32>
    %23 = vector.multi_reduction <add>, %22, %cst_16 [0] : vector<32x256xf32> to vector<256xf32>
    %24 = vector.shape_cast %23 : vector<256xf32> to vector<1x256xf32>
    %c0_17 = arith.constant 0 : index
    %c0_18 = arith.constant 0 : index
    %25 = vector.load %arg7[%c0_17, %c0_18] : memref<1x1xf32, #tpu.memory_space<vmem>>, vector<1x1xf32>
    %26 = vector.broadcast %25 : vector<1x1xf32> to vector<1x256xf32>
    %27 = arith.addf %24, %26 : vector<1x256xf32>
    %c0_19 = arith.constant 0 : index
    %c0_20 = arith.constant 0 : index
    %28 = vector.load %arg8[%c0_19, %c0_20] : memref<1x256xf32, #tpu.memory_space<vmem>>, vector<1x256xf32>
    tpu.vector_store %arg8[%c0_19, %c0_20], %27 {strides = array<i32>} : memref<1x256xf32, #tpu.memory_space<vmem>>, vector<1x256xf32>,
    return
  }
  func.func @transform_0(%arg0: i32) -> (i32, i32) {
    %c0_i32 = arith.constant 0 : i32
    %c0_i32_0 = arith.constant 0 : i32
    return %arg0, %c0_i32 : i32, i32
  }
  func.func @transform_1(%arg0: i32) -> (i32, i32) {
    %c0_i32 = arith.constant 0 : i32
    %c0_i32_0 = arith.constant 0 : i32
    %c0_i32_1 = arith.constant 0 : i32
    return %c0_i32, %c0_i32_0 : i32, i32
  }
  func.func @transform_2(%arg0: i32) -> (i32, i32) {
    %c0_i32 = arith.constant 0 : i32
    %c0_i32_0 = arith.constant 0 : i32
    %c0_i32_1 = arith.constant 0 : i32
    return %c0_i32, %c0_i32_0 : i32, i32
  }
  func.func @transform_3(%arg0: i32) -> (i32, i32) {
    %c0_i32 = arith.constant 0 : i32
    %c0_i32_0 = arith.constant 0 : i32
    %c0_i32_1 = arith.constant 0 : i32
    return %c0_i32, %c0_i32_0 : i32, i32
  }
  func.func @transform_4(%arg0: i32) -> (i32, i32) {
    %c0_i32 = arith.constant 0 : i32
    %c0_i32_0 = arith.constant 0 : i32
    %c0_i32_1 = arith.constant 0 : i32
    return %c0_i32, %c0_i32_0 : i32, i32
  }
  func.func @transform_5(%arg0: i32) -> (i32, i32) {
    %c0_i32 = arith.constant 0 : i32
    %c0_i32_0 = arith.constant 0 : i32
    %c0_i32_1 = arith.constant 0 : i32
    return %c0_i32, %c0_i32_0 : i32, i32
  }
  func.func @transform_6(%arg0: i32) -> (i32, i32) {
    %c0_i32 = arith.constant 0 : i32
    %c0_i32_0 = arith.constant 0 : i32
    %c0_i32_1 = arith.constant 0 : i32
    return %c0_i32, %c0_i32_0 : i32, i32
  }
  func.func @transform_7(%arg0: i32) -> (i32, i32) {
    %c0_i32 = arith.constant 0 : i32
    %c0_i32_0 = arith.constant 0 : i32
    return %c0_i32, %arg0 : i32, i32
  }
}

</mosaic_0001>

<llo_original>
// kernel: model_si_forward.1
$region0: #{model_si_forward.1}
  #allocation0 [shape = 'u32[]', space=smem, size = 0x4, offset = 0x4, fixed_abs, tag = 'smem constant byte address 0x4 - core index']
  #allocation1 [shape = 'u32[72,128]{1,0:T(1,128)}', space=vmem, size = 0x9000, scoped, tag = 'internal scratch']
  #allocation2 [shape = 'f32[1,1]{1,0:T(1,128)S(1)}', space=vmem, size = 0x200, scoped, tag = 'scoped memory for model_si_forward.1']
  %s0 = inlined_call_operand.vmem [shape: f32[512,16], index: 0, kind: input, shape index: {}]
  %s1 = inlined_call_operand.vmem [shape: f32[32,16], index: 1, kind: input, shape index: {}]
  %s2 = inlined_call_operand.vmem [shape: f32[32,1], index: 2, kind: input, shape index: {}]
  %s3 = inlined_call_operand.vmem [shape: f32[32,32], index: 3, kind: input, shape index: {}]
  %s4 = inlined_call_operand.vmem [shape: f32[32,1], index: 4, kind: input, shape index: {}]
  %s5 = inlined_call_operand.vmem [shape: f32[32,1], index: 5, kind: input, shape index: {}]
  %s6 = inlined_call_operand.<no memory space> [shape: f32[1,1], index: 6, kind: input, shape index: {}]
  %s7 = inlined_call_operand.hbm [shape: f32[1,512], index: 7, kind: output, shape index: {}]
  %s8 = sld [smem:[#allocation0]]
  $region61: #{model_si_forward.1} parent=0
    _
  %s10 = ssub.s32 1, %s8
  %s11 = scalar_select 0, %s10, %s8
  %v12 = vstv %s6
  %13 = vst [vmem:[#allocation2] sm:$0x1] %v12
  $region1: #{model_si_forward.1} parent=0
    #allocation3 [shape = 'u8[2048]{0}', space=vmem, size = 0x800, scoped, tag = 'output window, operand 0']
    #allocation4 [shape = 's32[2]{0}', space=sflag, size = 0x8, scoped, tag = 'scoped memory for model_si_forward.1']
    %14 = vsyncpa [#allocation4], 0
    %s15 = scalar_lea.sflag [#allocation4], 1
    %16 = vsyncpa %s15, 0
    loop: start=0, step=1, limit=4
    $region2: #{model_si_forward.1} parent=1 // loop_pre_header
      _
    $region3: #{model_si_forward.1} parent=1 // loop_header
      %s18 = sphi 0, %s22
      %p19 = scmp.ge.s32.totalorder %s18, 4
      %s28 = sphi 0, %s30
      %s31 = sphi 0, %s28
      %s32 = sphi 0, %s31
      %s48 = sphi 0, %s32
      %s52 = sphi 0, %s52
      %s54 = sphi 0, %s52
      %s55 = sphi 0, %s54
      %s69 = sphi 0, %s55
      %s73 = sphi 0, %s73
      %s75 = sphi 0, %s73
      %s76 = sphi 0, %s75
      %s90 = sphi 0, %s76
      %s94 = sphi 0, %s94
      %s96 = sphi 0, %s94
      %s97 = sphi 0, %s96
      %s111 = sphi 0, %s97
      %s115 = sphi 0, %s115
      %s117 = sphi 0, %s115
      %s118 = sphi 0, %s117
      %s132 = sphi 0, %s118
      %s136 = sphi 0, %s136
      %s138 = sphi 0, %s136
      %s139 = sphi 0, %s138
      %s153 = sphi 0, %s139
      %s157 = sphi 0, %s157
      %s159 = sphi 0, %s157
      %s160 = sphi 0, %s159
      %s174 = sphi 0, %s160
      %s180 = sphi 0, %s182
      %s183 = sphi 0, %s180
      %s184 = sphi 0, %s183
      %s200 = sphi 0, %s184
    $region4: #{model_si_forward.1} parent=1 // loop_header_branch
      %21 = sbr.rel (%p19) target = $region8
    $region5: #{model_si_forward.1} parent=1 // loop_body
      %s23 = ssub.s32 %s18, 1
      %s24 = ssub.s32 %s18, 2
      %s25 = sadd.s32 %s18, 1
      %s26 = ssub.s32 %s18, %s25
      %p27 = scmp.eq.s32.totalorder %s26, 0
      %s29 = sadd.s32 %s28, 1
      %s30 = scalar_select %p27, %s28, %s29
      %p33 = pneg %p27
      %p34 = scmp.eq.s32.totalorder %s18, 1
      %p35 = por %p33, %p34
      %p36 = scmp.ne.s32.totalorder %s28, %s31
      %p37 = scmp.eq.s32.totalorder %s18, 0
      %p38 = por %p36, %p37
      %p39 = scmp.ne.s32.totalorder %s28, %s31
      %p40 = scmp.eq.s32.totalorder %s23, 1
      %p41 = por %p39, %p40
      %p42 = scmp.ne.s32.totalorder %s31, %s32
      %p43 = scmp.eq.s32.totalorder %s23, 0
      %p44 = por %p42, %p43
      %p45 = scmp.ne.s32.totalorder %s31, %s32
      %p46 = scmp.eq.s32.totalorder %s24, 1
      %p47 = por %p45, %p46
      %p49 = scmp.ne.s32.totalorder %s32, %s48
      %p50 = scmp.eq.s32.totalorder %s24, 0
      %p51 = por %p49, %p50
      %s53 = sadd.s32 %s52, 1
      %p56 = scmp.eq.s32.totalorder %s18, 1
      %p57 = scmp.ne.s32.totalorder %s52, %s54
      %p58 = scmp.eq.s32.totalorder %s18, 0
      %p59 = por %p57, %p58
      %p60 = scmp.ne.s32.totalorder %s52, %s54
      %p61 = scmp.eq.s32.totalorder %s23, 1
      %p62 = por %p60, %p61
      %p63 = scmp.ne.s32.totalorder %s54, %s55
      %p64 = scmp.eq.s32.totalorder %s23, 0
      %p65 = por %p63, %p64
      %p66 = scmp.ne.s32.totalorder %s54, %s55
      %p67 = scmp.eq.s32.totalorder %s24, 1
      %p68 = por %p66, %p67
      %p70 = scmp.ne.s32.totalorder %s55, %s69
      %p71 = scmp.eq.s32.totalorder %s24, 0
      %p72 = por %p70, %p71
      %s74 = sadd.s32 %s73, 1
      %p77 = scmp.eq.s32.totalorder %s18, 1
      %p78 = scmp.ne.s32.totalorder %s73, %s75
      %p79 = scmp.eq.s32.totalorder %s18, 0
      %p80 = por %p78, %p79
      %p81 = scmp.ne.s32.totalorder %s73, %s75
      %p82 = scmp.eq.s32.totalorder %s23, 1
      %p83 = por %p81, %p82
      %p84 = scmp.ne.s32.totalorder %s75, %s76
      %p85 = scmp.eq.s32.totalorder %s23, 0
      %p86 = por %p84, %p85
      %p87 = scmp.ne.s32.totalorder %s75, %s76
      %p88 = scmp.eq.s32.totalorder %s24, 1
      %p89 = por %p87, %p88
      %p91 = scmp.ne.s32.totalorder %s76, %s90
      %p92 = scmp.eq.s32.totalorder %s24, 0
      %p93 = por %p91, %p92
      %s95 = sadd.s32 %s94, 1
      %p98 = scmp.eq.s32.totalorder %s18, 1
      %p99 = scmp.ne.s32.totalorder %s94, %s96
      %p100 = scmp.eq.s32.totalorder %s18, 0
      %p101 = por %p99, %p100
      %p102 = scmp.ne.s32.totalorder %s94, %s96
      %p103 = scmp.eq.s32.totalorder %s23, 1
      %p104 = por %p102, %p103
      %p105 = scmp.ne.s32.totalorder %s96, %s97
      %p106 = scmp.eq.s32.totalorder %s23, 0
      %p107 = por %p105, %p106
      %p108 = scmp.ne.s32.totalorder %s96, %s97
      %p109 = scmp.eq.s32.totalorder %s24, 1
      %p110 = por %p108, %p109
      %p112 = scmp.ne.s32.totalorder %s97, %s111
      %p113 = scmp.eq.s32.totalorder %s24, 0
      %p114 = por %p112, %p113
      %s116 = sadd.s32 %s115, 1
      %p119 = scmp.eq.s32.totalorder %s18, 1
      %p120 = scmp.ne.s32.totalorder %s115, %s117
      %p121 = scmp.eq.s32.totalorder %s18, 0
      %p122 = por %p120, %p121
      %p123 = scmp.ne.s32.totalorder %s115, %s117
      %p124 = scmp.eq.s32.totalorder %s23, 1
      %p125 = por %p123, %p124
      %p126 = scmp.ne.s32.totalorder %s117, %s118
      %p127 = scmp.eq.s32.totalorder %s23, 0
      %p128 = por %p126, %p127
      %p129 = scmp.ne.s32.totalorder %s117, %s118
      %p130 = scmp.eq.s32.totalorder %s24, 1
      %p131 = por %p129, %p130
      %p133 = scmp.ne.s32.totalorder %s118, %s132
      %p134 = scmp.eq.s32.totalorder %s24, 0
      %p135 = por %p133, %p134
      %s137 = sadd.s32 %s136, 1
      %p140 = scmp.eq.s32.totalorder %s18, 1
      %p141 = scmp.ne.s32.totalorder %s136, %s138
      %p142 = scmp.eq.s32.totalorder %s18, 0
      %p143 = por %p141, %p142
      %p144 = scmp.ne.s32.totalorder %s136, %s138
      %p145 = scmp.eq.s32.totalorder %s23, 1
      %p146 = por %p144, %p145
      %p147 = scmp.ne.s32.totalorder %s138, %s139
      %p148 = scmp.eq.s32.totalorder %s23, 0
      %p149 = por %p147, %p148
      %p150 = scmp.ne.s32.totalorder %s138, %s139
      %p151 = scmp.eq.s32.totalorder %s24, 1
      %p152 = por %p150, %p151
      %p154 = scmp.ne.s32.totalorder %s139, %s153
      %p155 = scmp.eq.s32.totalorder %s24, 0
      %p156 = por %p154, %p155
      %s158 = sadd.s32 %s157, 1
      %p161 = scmp.eq.s32.totalorder %s18, 1
      %p162 = scmp.ne.s32.totalorder %s157, %s159
      %p163 = scmp.eq.s32.totalorder %s18, 0
      %p164 = por %p162, %p163
      %p165 = scmp.ne.s32.totalorder %s157, %s159
      %p166 = scmp.eq.s32.totalorder %s23, 1
      %p167 = por %p165, %p166
      %p168 = scmp.ne.s32.totalorder %s159, %s160
      %p169 = scmp.eq.s32.totalorder %s23, 0
      %p170 = por %p168, %p169
      %p171 = scmp.ne.s32.totalorder %s159, %s160
      %p172 = scmp.eq.s32.totalorder %s24, 1
      %p173 = por %p171, %p172
      %p175 = scmp.ne.s32.totalorder %s160, %s174
      %p176 = scmp.eq.s32.totalorder %s24, 0
      %p177 = por %p175, %p176
      %s178 = ssub.s32 %s18, %s25
      %p179 = scmp.eq.s32.totalorder %s178, 0
      %s181 = sadd.s32 %s180, 1
      %s182 = scalar_select %p179, %s180, %s181
      %p185 = pneg %p179
      %p186 = scmp.eq.s32.totalorder %s18, 1
      %p187 = por %p185, %p186
      %p188 = scmp.ne.s32.totalorder %s180, %s183
      %p189 = scmp.eq.s32.totalorder %s18, 0
      %p190 = por %p188, %p189
      %p191 = scmp.ne.s32.totalorder %s180, %s183
      %p192 = scmp.eq.s32.totalorder %s23, 1
      %p193 = por %p191, %p192
      %p194 = scmp.ne.s32.totalorder %s183, %s184
      %p195 = scmp.eq.s32.totalorder %s23, 0
      %p196 = por %p194, %p195
      %p197 = scmp.ne.s32.totalorder %s183, %s184
      %p198 = scmp.eq.s32.totalorder %s24, 1
      %p199 = por %p197, %p198
      %p201 = scmp.ne.s32.totalorder %s184, %s200
      %p202 = scmp.eq.s32.totalorder %s24, 0
      %p203 = por %p201, %p202
      %p204 = scmp.le.s32.totalorder 1, %s18
      %p205 = scmp.lt.s32.totalorder %s18, 3
      %p206 = pnand %p204, %p205
      %p207 = pneg %p206
      // Predicated region
      $region9: #{model_si_forward.1} parent=5 // pred_check
        _
      $region10: #{model_si_forward.1} parent=5 // pred_check_branch
        %209 = sbr.rel (%p206) target = $region12
      $region11: #{model_si_forward.1} parent=5 // pred_region
        %s210 = ssub.s32 %s18, 1
        // Predicated region
        $region13: #{model_si_forward.1} parent=11 // pred_check
          %p211 = pneg %p65
        $region14: #{model_si_forward.1} parent=11 // pred_check_branch
          %213 = sbr.rel (%p211) target = $region16
        $region15: #{model_si_forward.1} parent=11 // pred_region
          _
        $region16: #{model_si_forward.1} parent=11 // pred_fallthru
          _
        // Predicated region
        $region17: #{model_si_forward.1} parent=11 // pred_check
          %p214 = pneg %p86
        $region18: #{model_si_forward.1} parent=11 // pred_check_branch
          %216 = sbr.rel (%p214) target = $region20
        $region19: #{model_si_forward.1} parent=11 // pred_region
          _
        $region20: #{model_si_forward.1} parent=11 // pred_fallthru
          _
        // Predicated region
        $region21: #{model_si_forward.1} parent=11 // pred_check
          %p217 = pneg %p107
        $region22: #{model_si_forward.1} parent=11 // pred_check_branch
          %219 = sbr.rel (%p217) target = $region24
        $region23: #{model_si_forward.1} parent=11 // pred_region
          _
        $region24: #{model_si_forward.1} parent=11 // pred_fallthru
          _
        // Predicated region
        $region25: #{model_si_forward.1} parent=11 // pred_check
          %p220 = pneg %p128
        $region26: #{model_si_forward.1} parent=11 // pred_check_branch
          %222 = sbr.rel (%p220) target = $region28
        $region27: #{model_si_forward.1} parent=11 // pred_region
          _
        $region28: #{model_si_forward.1} parent=11 // pred_fallthru
          _
        // Predicated region
        $region29: #{model_si_forward.1} parent=11 // pred_check
          %p223 = pneg %p149
        $region30: #{model_si_forward.1} parent=11 // pred_check_branch
          %225 = sbr.rel (%p223) target = $region32
        $region31: #{model_si_forward.1} parent=11 // pred_region
          _
        $region32: #{model_si_forward.1} parent=11 // pred_fallthru
          _
        // Predicated region
        $region33: #{model_si_forward.1} parent=11 // pred_check
          %p226 = pneg %p170
        $region34: #{model_si_forward.1} parent=11 // pred_check_branch
          %228 = sbr.rel (%p226) target = $region36
        $region35: #{model_si_forward.1} parent=11 // pred_region
          _
        $region36: #{model_si_forward.1} parent=11 // pred_fallthru
          _
      $region12: #{model_si_forward.1} parent=5 // pred_fallthru
        _
      %p229 = scmp.lt.s32.totalorder %s18, 2
      // Predicated region
      $region37: #{model_si_forward.1} parent=5 // pred_check
        %p230 = pneg %p229
      $region38: #{model_si_forward.1} parent=5 // pred_check_branch
        %232 = sbr.rel (%p230) target = $region40
      $region39: #{model_si_forward.1} parent=5 // pred_region
        // Predicated region
        $region41: #{model_si_forward.1} parent=39 // pred_check
          %p233 = pneg %p38
        $region42: #{model_si_forward.1} parent=39 // pred_check_branch
          %235 = sbr.rel (%p233) target = $region44
        $region43: #{model_si_forward.1} parent=39 // pred_region
          %s236 = smul.u32 32, %s18
          %p237 = scmp.lt.s32.totalorder %s236, 63
          %s238 = scalar_select %p237, %s236, 63
          %s239 = smul.addr %s238, 8
          %s240 = scalar_lea.vmem %s0, %s239
          %s241 = smul.u32 32, %s18
        $region44: #{model_si_forward.1} parent=39 // pred_fallthru
          _
      $region40: #{model_si_forward.1} parent=5 // pred_fallthru
        _
      %p242 = scmp.le.s32.totalorder 1, %s18
      %p243 = scmp.lt.s32.totalorder %s18, 3
      %p244 = pnand %p242, %p243
      %p245 = pneg %p244
      // Predicated region
      $region45: #{model_si_forward.1} parent=5 // pred_check
        _
      $region46: #{model_si_forward.1} parent=5 // pred_check_branch
        %247 = sbr.rel (%p244) target = $region48
      $region47: #{model_si_forward.1} parent=5 // pred_region
        %s248 = ssub.s32 %s18, 1
        %s249 = smul.u32 32, %s23
        %p250 = scmp.lt.s32.totalorder %s249, 63
        %s251 = scalar_select %p250, %s249, 63
        %s252 = smul.addr %s251, 8
        %s253 = scalar_lea.vmem %s0, %s252
        %p254 = pneg %p44
        %p255 = pneg %p41
        %p256 = pneg %p65
        %p257 = pneg %p62
        %p258 = pneg %p86
        %p259 = pneg %p83
        %p260 = pneg %p107
        %p261 = pneg %p104
        %p262 = pneg %p128
        %p263 = pneg %p125
        %p264 = pneg %p149
        %p265 = pneg %p146
        %p266 = pneg %p170
        %p267 = pneg %p167
        %p268 = pneg %p196
        %p269 = pneg %p193
        %s270 = sand.u32 %s183, 1
        %s271 = scalar_lea.sflag [#allocation4], %s270
        %s272 = sand.u32 %s183, 1
        %s273 = smul.addr %s272, 2
        %s274 = scalar_lea.vmem [#allocation3], %s273
        %s275 = smul.u32 32, %s23
        %p276 = scmp.lt.s32.totalorder %s275, 63
        %s277 = scalar_select %p276, %s275, 63
        %s278 = smul.addr %s277, 8
        %s279 = scalar_lea.vmem %s0, %s278
        %s280 = smul.u32 32, %s23
        %s281 = smul.u32 2, %s23
        %v282 = vld [vmem:[%s279] sm:$0xff]
        %v283 = vld [vmem:[%s279 + $0x8] sm:$0xff]
        %v284 = vld [vmem:[%s279 + $0x10] sm:$0xff]
        %v285 = vld [vmem:[%s279 + $0x18] sm:$0xff]
        %v286 = vld [vmem:[%s279 + $0x20] sm:$0xff]
        %v287 = vld [vmem:[%s279 + $0x28] sm:$0xff]
        %v288 = vld [vmem:[%s279 + $0x30] sm:$0xff]
        %v289 = vld [vmem:[%s279 + $0x38] sm:$0xff]
        %v290 = vld [vmem:[%s279 + $0x40] sm:$0xff]
        %v291 = vld [vmem:[%s279 + $0x48] sm:$0xff]
        %v292 = vld [vmem:[%s279 + $0x50] sm:$0xff]
        %v293 = vld [vmem:[%s279 + $0x58] sm:$0xff]
        %v294 = vld [vmem:[%s279 + $0x60] sm:$0xff]
        %v295 = vld [vmem:[%s279 + $0x68] sm:$0xff]
        %v296 = vld [vmem:[%s279 + $0x70] sm:$0xff]
        %v297 = vld [vmem:[%s279 + $0x78] sm:$0xff]
        %v298 = vld [vmem:[%s279 + $0x80] sm:$0xff]
        %v299 = vld [vmem:[%s279 + $0x88] sm:$0xff]
        %v300 = vld [vmem:[%s279 + $0x90] sm:$0xff]
        %v301 = vld [vmem:[%s279 + $0x98] sm:$0xff]
        %v302 = vld [vmem:[%s279 + $0xa0] sm:$0xff]
        %v303 = vld [vmem:[%s279 + $0xa8] sm:$0xff]
        %v304 = vld [vmem:[%s279 + $0xb0] sm:$0xff]
        %v305 = vld [vmem:[%s279 + $0xb8] sm:$0xff]
        %v306 = vld [vmem:[%s279 + $0xc0] sm:$0xff]
        %v307 = vld [vmem:[%s279 + $0xc8] sm:$0xff]
        %v308 = vld [vmem:[%s279 + $0xd0] sm:$0xff]
        %v309 = vld [vmem:[%s279 + $0xd8] sm:$0xff]
        %v310 = vld [vmem:[%s279 + $0xe0] sm:$0xff]
        %v311 = vld [vmem:[%s279 + $0xe8] sm:$0xff]
        %v312 = vld [vmem:[%s279 + $0xf0] sm:$0xff]
        %v313 = vld [vmem:[%s279 + $0xf8] sm:$0xff]
        %v314 = vld [vmem:[%s1] sm:$0xff]
        %v315 = vld [vmem:[%s1 + $0x8] sm:$0xff]
        %v316 = vld [vmem:[%s1 + $0x10] sm:$0xff]
        %v317 = vld [vmem:[%s1 + $0x18] sm:$0xff]
        %v318 = vld [vmem:[%s2] sm:$0xff]
        %v319 = vld [vmem:[%s2 + $0x8] sm:$0xff]
        %v320 = vld [vmem:[%s2 + $0x10] sm:$0xff]
        %v321 = vld [vmem:[%s2 + $0x18] sm:$0xff]
        %323 = vset.pattern.permute.xlu0 0
        %324 = vperm.xlu0 %323, %v318
        %v325 = vpop.permute.xlu0 %324
        %328 = vset.pattern.permute.xlu0 0
        %329 = vperm.xlu0 %328, %v319
        %v330 = vpop.permute.xlu0 %329
        %333 = vset.pattern.permute.xlu0 0
        %334 = vperm.xlu0 %333, %v320
        %v335 = vpop.permute.xlu0 %334
        %338 = vset.pattern.permute.xlu0 0
        %339 = vperm.xlu0 %338, %v321
        %v340 = vpop.permute.xlu0 %339
        %vm342 = vcmask 130048
        %v344 = vsel %vm342, %v314, 0
        %v347 = vsel %vm342, %v315, 0
        %v350 = vsel %vm342, %v316, 0
        %v353 = vsel %vm342, %v317, 0
        %v356 = vsel %vm342, %v282, 0
        %v359 = vsel %vm342, %v283, 0
        %v362 = vsel %vm342, %v284, 0
        %v365 = vsel %vm342, %v285, 0
        %v368 = vsel %vm342, %v286, 0
        %v371 = vsel %vm342, %v287, 0
        %v374 = vsel %vm342, %v288, 0
        %v377 = vsel %vm342, %v289, 0
        %v380 = vsel %vm342, %v290, 0
        %v383 = vsel %vm342, %v291, 0
        %v386 = vsel %vm342, %v292, 0
        %v389 = vsel %vm342, %v293, 0
        %v392 = vsel %vm342, %v294, 0
        %v395 = vsel %vm342, %v295, 0
        %v398 = vsel %vm342, %v296, 0
        %v401 = vsel %vm342, %v297, 0
        %v404 = vsel %vm342, %v298, 0
        %v407 = vsel %vm342, %v299, 0
        %v410 = vsel %vm342, %v300, 0
        %v413 = vsel %vm342, %v301, 0
        %v416 = vsel %vm342, %v302, 0
        %v419 = vsel %vm342, %v303, 0
        %v422 = vsel %vm342, %v304, 0
        %v425 = vsel %vm342, %v305, 0
        %v428 = vsel %vm342, %v306, 0
        %v431 = vsel %vm342, %v307, 0
        %v434 = vsel %vm342, %v308, 0
        %v437 = vsel %vm342, %v309, 0
        %v440 = vsel %vm342, %v310, 0
        %v443 = vsel %vm342, %v311, 0
        %v446 = vsel %vm342, %v312, 0
        %v449 = vsel %vm342, %v313, 0
        %451 = vmatpush.xpose.msra.mxu0 %v401
        %452 = vmatpush.xpose.msra.mxu0 %v398
        %453 = vmatpush.xpose.msra.mxu0 %v395
        %454 = vmatpush.xpose.msra.mxu0 %v392
        %455 = vmatpush.xpose.msra.mxu0 %v389
        %456 = vmatpush.xpose.msra.mxu0 %v386
        %457 = vmatpush.xpose.msra.mxu0 %v383
        %458 = vmatpush.xpose.msra.mxu0 %v380
        %459 = vmatpush.xpose.msra.mxu0 %v377
        %460 = vmatpush.xpose.msra.mxu0 %v374
        %461 = vmatpush.xpose.msra.mxu0 %v371
        %462 = vmatpush.xpose.msra.mxu0 %v368
        %463 = vmatpush.xpose.msra.mxu0 %v365
        %464 = vmatpush.xpose.msra.mxu0 %v362
        %465 = vmatpush.xpose.msra.mxu0 %v359
        %466 = vmatpush.xpose.msra.mxu0 %v356
        %467 = vmatmul.f32.gmra.mxu0 %v344
        %v468 = vpop.f32.mrf.mxu0
        %v469 = vadd.f32 %v325, %v468
        %470 = vmatmul.f32.gmra.mxu0 %v347
        %v471 = vpop.f32.mrf.mxu0
        %v472 = vadd.f32 %v330, %v471
        %473 = vmatmul.f32.gmra.mxu0 %v350
        %v474 = vpop.f32.mrf.mxu0
        %v475 = vadd.f32 %v335, %v474
        %476 = vmatmul.f32.gmra.mxu0 %v353
        %v477 = vpop.f32.mrf.mxu0
        %v478 = vadd.f32 %v340, %v477
        %479 = vdwg.mxu0
        %480 = vmatpush.xpose.msra.mxu0 %v449
        %481 = vmatpush.xpose.msra.mxu0 %v446
        %482 = vmatpush.xpose.msra.mxu0 %v443
        %483 = vmatpush.xpose.msra.mxu0 %v440
        %484 = vmatpush.xpose.msra.mxu0 %v437
        %485 = vmatpush.xpose.msra.mxu0 %v434
        %486 = vmatpush.xpose.msra.mxu0 %v431
        %487 = vmatpush.xpose.msra.mxu0 %v428
        %488 = vmatpush.xpose.msra.mxu0 %v425
        %489 = vmatpush.xpose.msra.mxu0 %v422
        %490 = vmatpush.xpose.msra.mxu0 %v419
        %491 = vmatpush.xpose.msra.mxu0 %v416
        %492 = vmatpush.xpose.msra.mxu0 %v413
        %493 = vmatpush.xpose.msra.mxu0 %v410
        %494 = vmatpush.xpose.msra.mxu0 %v407
        %495 = vmatpush.xpose.msra.mxu0 %v404
        %496 = vmatmul.f32.gmra.mxu0 %v344
        %v497 = vpop.f32.mrf.mxu0
        %v498 = vadd.f32 %v325, %v497
        %499 = vmatmul.f32.gmra.mxu0 %v347
        %v500 = vpop.f32.mrf.mxu0
        %v501 = vadd.f32 %v330, %v500
        %502 = vmatmul.f32.gmra.mxu0 %v350
        %v503 = vpop.f32.mrf.mxu0
        %v504 = vadd.f32 %v335, %v503
        %505 = vmatmul.f32.gmra.mxu0 %v353
        %v506 = vpop.f32.mrf.mxu0
        %v507 = vadd.f32 %v340, %v506
        %508 = vdwg.mxu0
        %v509 = vsub.f32 0.0, %v469
        %v510 = vsub.f32 0.0, %v498
        %v511 = vsub.f32 0.0, %v472
        %v512 = vsub.f32 0.0, %v501
        %v513 = vsub.f32 0.0, %v475
        %v514 = vsub.f32 0.0, %v504
        %v515 = vsub.f32 0.0, %v478
        %v516 = vsub.f32 0.0, %v507
        %v517 = vmul.f32 %v509, 1.442695
        %v518 = vpow.pop %v517
        %v519 = vmul.f32 %v510, 1.442695
        %v520 = vpow.pop %v519
        %v521 = vmul.f32 %v511, 1.442695
        %v522 = vpow.pop %v521
        %v523 = vmul.f32 %v512, 1.442695
        %v524 = vpow.pop %v523
        %v525 = vmul.f32 %v513, 1.442695
        %v526 = vpow.pop %v525
        %v527 = vmul.f32 %v514, 1.442695
        %v528 = vpow.pop %v527
        %v529 = vmul.f32 %v515, 1.442695
        %v530 = vpow.pop %v529
        %v531 = vmul.f32 %v516, 1.442695
        %v532 = vpow.pop %v531
        %v533 = vadd.f32 %v518, 1.0
        %v534 = vadd.f32 %v520, 1.0
        %v535 = vadd.f32 %v522, 1.0
        %v536 = vadd.f32 %v524, 1.0
        %v537 = vadd.f32 %v526, 1.0
        %v538 = vadd.f32 %v528, 1.0
        %v539 = vadd.f32 %v530, 1.0
        %v540 = vadd.f32 %v532, 1.0
        %v541 = vrcp.pop %v533
        %v542 = vmul.f32 %v533, %v541
        %v543 = vsub.f32 1.0, %v542
        %v544 = vmul.f32 %v541, %v543
        %v545 = vadd.f32 %v541, %v544
        %vm546 = vweird.f32 %v533
        %vm547 = vweird.f32 %v541
        %vm548 = vmor %vm546, %vm547
        %v549 = vsel %vm548, %v541, %v545
        %v550 = vand.u32 2147483647, %v533
        %vm551 = vcmp.eq.f32.partialorder %v550, 8.507059e+37
        %v552 = vand.u32 %v533, 2147483648
        %v553 = vor.u32 1.1754944e-38, %v552
        %v554 = vsel %vm551, %v553, %v549
        %v555 = vmul.f32 1.0, %v554
        %v556 = vrcp.pop %v534
        %v557 = vmul.f32 %v534, %v556
        %v558 = vsub.f32 1.0, %v557
        %v559 = vmul.f32 %v556, %v558
        %v560 = vadd.f32 %v556, %v559
        %vm561 = vweird.f32 %v534
        %vm562 = vweird.f32 %v556
        %vm563 = vmor %vm561, %vm562
        %v564 = vsel %vm563, %v556, %v560
        %v565 = vand.u32 2147483647, %v534
        %vm566 = vcmp.eq.f32.partialorder %v565, 8.507059e+37
        %v567 = vand.u32 %v534, 2147483648
        %v568 = vor.u32 1.1754944e-38, %v567
        %v569 = vsel %vm566, %v568, %v564
        %v570 = vmul.f32 1.0, %v569
        %v571 = vrcp.pop %v535
        %v572 = vmul.f32 %v535, %v571
        %v573 = vsub.f32 1.0, %v572
        %v574 = vmul.f32 %v571, %v573
        %v575 = vadd.f32 %v571, %v574
        %vm576 = vweird.f32 %v535
        %vm577 = vweird.f32 %v571
        %vm578 = vmor %vm576, %vm577
        %v579 = vsel %vm578, %v571, %v575
        %v580 = vand.u32 2147483647, %v535
        %vm581 = vcmp.eq.f32.partialorder %v580, 8.507059e+37
        %v582 = vand.u32 %v535, 2147483648
        %v583 = vor.u32 1.1754944e-38, %v582
        %v584 = vsel %vm581, %v583, %v579
        %v585 = vmul.f32 1.0, %v584
        %v586 = vrcp.pop %v536
        %v587 = vmul.f32 %v536, %v586
        %v588 = vsub.f32 1.0, %v587
        %v589 = vmul.f32 %v586, %v588
        %v590 = vadd.f32 %v586, %v589
        %vm591 = vweird.f32 %v536
        %vm592 = vweird.f32 %v586
        %vm593 = vmor %vm591, %vm592
        %v594 = vsel %vm593, %v586, %v590
        %v595 = vand.u32 2147483647, %v536
        %vm596 = vcmp.eq.f32.partialorder %v595, 8.507059e+37
        %v597 = vand.u32 %v536, 2147483648
        %v598 = vor.u32 1.1754944e-38, %v597
        %v599 = vsel %vm596, %v598, %v594
        %v600 = vmul.f32 1.0, %v599
        %v601 = vrcp.pop %v537
        %v602 = vmul.f32 %v537, %v601
        %v603 = vsub.f32 1.0, %v602
        %v604 = vmul.f32 %v601, %v603
        %v605 = vadd.f32 %v601, %v604
        %vm606 = vweird.f32 %v537
        %vm607 = vweird.f32 %v601
        %vm608 = vmor %vm606, %vm607
        %v609 = vsel %vm608, %v601, %v605
        %v610 = vand.u32 2147483647, %v537
        %vm611 = vcmp.eq.f32.partialorder %v610, 8.507059e+37
        %v612 = vand.u32 %v537, 2147483648
        %v613 = vor.u32 1.1754944e-38, %v612
        %v614 = vsel %vm611, %v613, %v609
        %v615 = vmul.f32 1.0, %v614
        %v616 = vrcp.pop %v538
        %v617 = vmul.f32 %v538, %v616
        %v618 = vsub.f32 1.0, %v617
        %v619 = vmul.f32 %v616, %v618
        %v620 = vadd.f32 %v616, %v619
        %vm621 = vweird.f32 %v538
        %vm622 = vweird.f32 %v616
        %vm623 = vmor %vm621, %vm622
        %v624 = vsel %vm623, %v616, %v620
        %v625 = vand.u32 2147483647, %v538
        %vm626 = vcmp.eq.f32.partialorder %v625, 8.507059e+37
        %v627 = vand.u32 %v538, 2147483648
        %v628 = vor.u32 1.1754944e-38, %v627
        %v629 = vsel %vm626, %v628, %v624
        %v630 = vmul.f32 1.0, %v629
        %v631 = vrcp.pop %v539
        %v632 = vmul.f32 %v539, %v631
        %v633 = vsub.f32 1.0, %v632
        %v634 = vmul.f32 %v631, %v633
        %v635 = vadd.f32 %v631, %v634
        %vm636 = vweird.f32 %v539
        %vm637 = vweird.f32 %v631
        %vm638 = vmor %vm636, %vm637
        %v639 = vsel %vm638, %v631, %v635
        %v640 = vand.u32 2147483647, %v539
        %vm641 = vcmp.eq.f32.partialorder %v640, 8.507059e+37
        %v642 = vand.u32 %v539, 2147483648
        %v643 = vor.u32 1.1754944e-38, %v642
        %v644 = vsel %vm641, %v643, %v639
        %v645 = vmul.f32 1.0, %v644
        %v646 = vrcp.pop %v540
        %v647 = vmul.f32 %v540, %v646
        %v648 = vsub.f32 1.0, %v647
        %v649 = vmul.f32 %v646, %v648
        %v650 = vadd.f32 %v646, %v649
        %vm651 = vweird.f32 %v540
        %vm652 = vweird.f32 %v646
        %vm653 = vmor %vm651, %vm652
        %v654 = vsel %vm653, %v646, %v650
        %v655 = vand.u32 2147483647, %v540
        %vm656 = vcmp.eq.f32.partialorder %v655, 8.507059e+37
        %v657 = vand.u32 %v540, 2147483648
        %v658 = vor.u32 1.1754944e-38, %v657
        %v659 = vsel %vm656, %v658, %v654
        %v660 = vmul.f32 1.0, %v659
        %v661 = vld [vmem:[%s3] sm:$0xff]
        %v662 = vld [vmem:[%s3 + $0x8] sm:$0xff]
        %v663 = vld [vmem:[%s3 + $0x10] sm:$0xff]
        %v664 = vld [vmem:[%s3 + $0x18] sm:$0xff]
        %v665 = vld [vmem:[%s4] sm:$0xff]
        %v666 = vld [vmem:[%s4 + $0x8] sm:$0xff]
        %v667 = vld [vmem:[%s4 + $0x10] sm:$0xff]
        %v668 = vld [vmem:[%s4 + $0x18] sm:$0xff]
        %670 = vset.pattern.permute.xlu0 0
        %671 = vperm.xlu0 %670, %v665
        %v672 = vpop.permute.xlu0 %671
        %675 = vset.pattern.permute.xlu0 0
        %676 = vperm.xlu0 %675, %v666
        %v677 = vpop.permute.xlu0 %676
        %680 = vset.pattern.permute.xlu0 0
        %681 = vperm.xlu0 %680, %v667
        %v682 = vpop.permute.xlu0 %681
        %685 = vset.pattern.permute.xlu0 0
        %686 = vperm.xlu0 %685, %v668
        %v687 = vpop.permute.xlu0 %686
        %vm689 = vcmask 261120
        %v691 = vsel %vm689, %v661, 0
        %v694 = vsel %vm689, %v662, 0
        %v697 = vsel %vm689, %v663, 0
        %v700 = vsel %vm689, %v664, 0
        %702 = vmatpush.msra.mxu0 0.0
        %703 = vmatpush.msra.mxu0 0.0
        %704 = vmatpush.msra.mxu0 0.0
        %705 = vmatpush.msra.mxu0 0.0
        %706 = vmatpush.msra.mxu0 0.0
        %707 = vmatpush.msra.mxu0 0.0
        %708 = vmatpush.msra.mxu0 0.0
        %709 = vmatpush.msra.mxu0 0.0
        %710 = vmatpush.msra.mxu0 0.0
        %711 = vmatpush.msra.mxu0 0.0
        %712 = vmatpush.msra.mxu0 0.0
        %713 = vmatpush.msra.mxu0 0.0
        %714 = vmatpush.msra.mxu0 %v645
        %715 = vmatpush.msra.mxu0 %v615
        %716 = vmatpush.msra.mxu0 %v585
        %717 = vmatpush.msra.mxu0 %v555
        %718 = vmatmul.f32.gmra.mxu0 %v691
        %v719 = vpop.f32.mrf.mxu0
        %v720 = vadd.f32 %v672, %v719
        %721 = vmatmul.f32.gmra.mxu0 %v694
        %v722 = vpop.f32.mrf.mxu0
        %v723 = vadd.f32 %v677, %v722
        %724 = vmatmul.f32.gmra.mxu0 %v697
        %v725 = vpop.f32.mrf.mxu0
        %v726 = vadd.f32 %v682, %v725
        %727 = vmatmul.f32.gmra.mxu0 %v700
        %v728 = vpop.f32.mrf.mxu0
        %v729 = vadd.f32 %v687, %v728
        %730 = vdwg.mxu0
        %731 = vmatpush.msra.mxu0 0.0
        %732 = vmatpush.msra.mxu0 0.0
        %733 = vmatpush.msra.mxu0 0.0
        %734 = vmatpush.msra.mxu0 0.0
        %735 = vmatpush.msra.mxu0 0.0
        %736 = vmatpush.msra.mxu0 0.0
        %737 = vmatpush.msra.mxu0 0.0
        %738 = vmatpush.msra.mxu0 0.0
        %739 = vmatpush.msra.mxu0 0.0
        %740 = vmatpush.msra.mxu0 0.0
        %741 = vmatpush.msra.mxu0 0.0
        %742 = vmatpush.msra.mxu0 0.0
        %743 = vmatpush.msra.mxu0 %v660
        %744 = vmatpush.msra.mxu0 %v630
        %745 = vmatpush.msra.mxu0 %v600
        %746 = vmatpush.msra.mxu0 %v570
        %747 = vmatmul.f32.gmra.mxu0 %v691
        %v748 = vpop.f32.mrf.mxu0
        %v749 = vadd.f32 %v672, %v748
        %750 = vmatmul.f32.gmra.mxu0 %v694
        %v751 = vpop.f32.mrf.mxu0
        %v752 = vadd.f32 %v677, %v751
        %753 = vmatmul.f32.gmra.mxu0 %v697
        %v754 = vpop.f32.mrf.mxu0
        %v755 = vadd.f32 %v682, %v754
        %756 = vmatmul.f32.gmra.mxu0 %v700
        %v757 = vpop.f32.mrf.mxu0
        %v758 = vadd.f32 %v687, %v757
        %759 = vdwg.mxu0
        %v760 = vmax.f32 %v720, 0.0
        %v761 = vmax.f32 %v749, 0.0
        %v762 = vmax.f32 %v723, 0.0
        %v763 = vmax.f32 %v752, 0.0
        %v764 = vmax.f32 %v726, 0.0
        %v765 = vmax.f32 %v755, 0.0
        %v766 = vmax.f32 %v729, 0.0
        %v767 = vmax.f32 %v758, 0.0
        %v768 = vld [vmem:[%s5] sm:$0xff]
        %v769 = vld [vmem:[%s5 + $0x8] sm:$0xff]
        %v770 = vld [vmem:[%s5 + $0x10] sm:$0xff]
        %v771 = vld [vmem:[%s5 + $0x18] sm:$0xff]
        %773 = vset.pattern.permute.xlu0 0
        %774 = vperm.xlu0 %773, %v768
        %v775 = vpop.permute.xlu0 %774
        %778 = vset.pattern.permute.xlu0 0
        %779 = vperm.xlu0 %778, %v769
        %v780 = vpop.permute.xlu0 %779
        %783 = vset.pattern.permute.xlu0 0
        %784 = vperm.xlu0 %783, %v770
        %v785 = vpop.permute.xlu0 %784
        %788 = vset.pattern.permute.xlu0 0
        %789 = vperm.xlu0 %788, %v771
        %v790 = vpop.permute.xlu0 %789
        %v792 = vmul.f32 %v775, %v760
        %v793 = vmul.f32 %v775, %v761
        %v794 = vmul.f32 %v780, %v762
        %v795 = vmul.f32 %v780, %v763
        %v796 = vmul.f32 %v785, %v764
        %v797 = vmul.f32 %v785, %v765
        %v798 = vmul.f32 %v790, %v766
        %v799 = vmul.f32 %v790, %v767
        %v800 = vadd.f32 %v792, %v794
        %v801 = vadd.f32 %v800, %v796
        %v802 = vadd.f32 %v801, %v798
        %v803 = vrot.slane %v802, 4
        %v804 = vadd.f32 %v802, %v803
        %v805 = vrot.slane %v804, 2
        %v806 = vadd.f32 %v804, %v805
        %v807 = vrot.slane %v806, 1
        %v808 = vadd.f32 %v806, %v807
        %v809 = vadd.f32 %v793, %v795
        %v810 = vadd.f32 %v809, %v797
        %v811 = vadd.f32 %v810, %v799
        %v812 = vrot.slane %v811, 4
        %v813 = vadd.f32 %v811, %v812
        %v814 = vrot.slane %v813, 2
        %v815 = vadd.f32 %v813, %v814
        %v816 = vrot.slane %v815, 1
        %v817 = vadd.f32 %v815, %v816
        %v818 = vld [vmem:[#allocation2] sm:$0x1]
        %820 = vset.pattern.permute.xlu0 0
        %821 = vperm.xlu0 %820, %v818
        %v822 = vpop.permute.xlu0 %821
        %v824 = vperm.slane %v822, 0
        %v825 = vadd.f32 %v808, %v824
        %v826 = vadd.f32 %v817, %v824
        %v829 = vrot.slane %v826, 7
        %vm830 = vcmask 1040384
        %v831 = vsel %vm830, %v825, %v829
        %v833 = vlaneseq
        %vm834 = vcmp.ge.s32.totalorder %v833, 0
        %vm835 = vcmp.lt.s32.totalorder %v833, 256
        %vm836 = vmand %vm834, %vm835
        %837 = vst.msk [vmem:[%s274] sm:$0x3] %vm836, %v831
        %s838 = sand.u32 %s183, 1
        %s839 = scalar_lea.sflag [#allocation4], %s838
        %s840 = sand.u32 %s183, 1
        %s841 = smul.addr %s840, 2
        %s842 = scalar_lea.vmem [#allocation3], %s841
        // Predicated region
        $region49: #{model_si_forward.1} parent=47 // pred_check
          %p843 = pneg %p193
        $region50: #{model_si_forward.1} parent=47 // pred_check_branch
          %845 = sbr.rel (%p843) target = $region52
        $region51: #{model_si_forward.1} parent=47 // pred_region
          %s846 = smul.u32 2, %s23
          %848 = vsyncadd %s839, 0
          %s849 = scalar_lea.hbm %s7, %s846
          %s851 = sshll.u32 %s842, 4
          %s852 = int_to_ptr.vmem [resolvable:$true] %s851
          %s853 = sshll.u32 %s849, 4
          %s854 = int_to_ptr.hbm [resolvable:$true] %s853
          %856 = dma.vmem_to_hbm [thread:$0]  %s852, 32, %s854, %s839
        $region52: #{model_si_forward.1} parent=47 // pred_fallthru
          _
      $region48: #{model_si_forward.1} parent=5 // pred_fallthru
        _
      %p857 = scmp.le.s32.totalorder 2, %s18
      // Predicated region
      $region53: #{model_si_forward.1} parent=5 // pred_check
        %p858 = pneg %p857
      $region54: #{model_si_forward.1} parent=5 // pred_check_branch
        %860 = sbr.rel (%p858) target = $region56
      $region55: #{model_si_forward.1} parent=5 // pred_region
        %s861 = ssub.s32 %s18, 2
        // Predicated region
        $region57: #{model_si_forward.1} parent=55 // pred_check
          %p862 = pneg %p199
        $region58: #{model_si_forward.1} parent=55 // pred_check_branch
          %864 = sbr.rel (%p862) target = $region60
        $region59: #{model_si_forward.1} parent=55 // pred_region
          %s865 = sand.u32 %s184, 1
          %s866 = scalar_lea.sflag [#allocation4], %s865
          %s867 = sand.u32 %s184, 1
          %s868 = smul.addr %s867, 2
          %s869 = scalar_lea.vmem [#allocation3], %s868
          %871 = dma.done %s866, 32
        $region60: #{model_si_forward.1} parent=55 // pred_fallthru
          _
      $region56: #{model_si_forward.1} parent=5 // pred_fallthru
        _
    $region6: #{model_si_forward.1} parent=1 // loop_footer
      %s22 = sadd.s32 1, %s18
    $region7: #{model_si_forward.1} parent=1 // loop_footer_branch
      %17 = sbr.rel target = $region3
    $region8: #{model_si_forward.1} parent=1 // loop_exit
      _
    %872 = vsyncpa [#allocation4], 1
    %s873 = scalar_lea.sflag [#allocation4], 1
    %874 = vsyncpa %s873, 1

</llo_original>
